<compile_context>
chip_gen: v7x
topology: tpu7x:2x2x1
jax: 0.10.0
libtpu: 0.0.40
codegen_flags: <defaults>
</compile_context>

<pallas_src>
import jax
import jax.numpy as jnp
from jax.experimental import pallas as pl
from jax.experimental.pallas import tpu as pltpu


def _dueling_folded_kernel(x_ref, w1_ref, b1_ref, wc_ref, bc_ref, out_ref):
    # fc1 + ReLU: bf16 inputs to the MXU, f32 accumulate / bias-add / relu
    # (bias & relu stay f32 so this also maps cleanly onto v5e's f32-only VPU).
    x = x_ref[...].astype(jnp.bfloat16)
    h = jnp.dot(x, w1_ref[...], preferred_element_type=jnp.float32) + b1_ref[...]
    h = jnp.maximum(h, 0.0)
    # Folded value-stream + advantage-stream + dueling combine: one matmul.
    out = jnp.dot(h.astype(jnp.bfloat16), wc_ref[...],
                  preferred_element_type=jnp.float32) + bc_ref[...]
    out_ref[...] = out


def prepare_params(p):
    """Fold the activation-free V/A layers and the dueling combine into one
    (64, NA) weight + (1, NA) bias (fp32 math, then bf16 for the MXU)."""
    WV = p["wv1"] @ p["wv2"]                  # (64, 1)
    bV = p["bv1"] @ p["wv2"] + p["bv2"]       # (1, 1)
    WA = p["wa1"] @ p["wa2"]                  # (64, NA)
    bA = p["ba1"] @ p["wa2"] + p["ba2"]       # (1, NA)
    # out_j = V + A_j - mean_k A_k
    w_comb = WA - WA.mean(axis=1, keepdims=True) + WV    # (64, NA)
    b_comb = bA - bA.mean(axis=1, keepdims=True) + bV    # (1, NA)
    return dict(
        w1=p["w1"].astype(jnp.bfloat16),
        b1=p["b1"].astype(jnp.float32),
        wc=w_comb.astype(jnp.bfloat16),
        bc=b_comb.astype(jnp.float32),
    )


def advantage_finance_net_with_position(x, prepared, *, tb_max=512):
    """x: (B, 64) float32. prepared: output of prepare_params."""
    B, F = x.shape
    H = prepared["w1"].shape[1]
    NA = prepared["wc"].shape[1]

    # Batch tiling: full-array block for small B (block == array dims), else
    # 512-row tiles (multiple of 8) with zero-padding of the batch.
    if B <= tb_max:
        TB, Bp = B, B
    else:
        TB = tb_max
        Bp = pl.cdiv(B, TB) * TB
    xp = x if Bp == B else jnp.pad(x, ((0, Bp - B), (0, 0)))

    out = pl.pallas_call(
        _dueling_folded_kernel,
        out_shape=jax.ShapeDtypeStruct((Bp, NA), jnp.float32),
        grid=(Bp // TB,),
        in_specs=[
            pl.BlockSpec((TB, F), lambda i: (i, 0)),   # x tile (pipelined)
            pl.BlockSpec((F, H), lambda i: (0, 0)),    # W1 resident
            pl.BlockSpec((1, H), lambda i: (0, 0)),    # b1 resident
            pl.BlockSpec((H, NA), lambda i: (0, 0)),   # folded W resident
            pl.BlockSpec((1, NA), lambda i: (0, 0)),   # folded b resident
        ],
        out_specs=pl.BlockSpec((TB, NA), lambda i: (i, 0)),
        compiler_params=pltpu.CompilerParams(
            dimension_semantics=("parallel",),         # shard batch tiles on v7x's 2 TCs
            vmem_limit_bytes=32 * 1024 * 1024,         # well under v7x's 64 MiB VMEM
        ),
    )(xp, prepared["w1"], prepared["b1"], prepared["wc"], prepared["bc"])
    return out[:B]


def init_params(key, hidden=64, num_actions=4):
    """PyTorch-Linear-style init (uniform(-1/sqrt(in), 1/sqrt(in))).
    Weights stored pre-transposed as (in, out); biases as (1, out)."""
    def linear(k, fan_in, fan_out):
        kw, kb = jax.random.split(k)
        bound = 1.0 / jnp.sqrt(fan_in)
        w = jax.random.uniform(kw, (fan_in, fan_out), jnp.float32, -bound, bound)
        b = jax.random.uniform(kb, (1, fan_out), jnp.float32, -bound, bound)
        return w, b

    k1, k2, k3, k4, k5 = jax.random.split(key, 5)
    w1, b1 = linear(k1, hidden, hidden)          # fc1:  Linear(64, 64)
    wv1, bv1 = linear(k2, hidden, hidden)        # fcV1: Linear(64, 64)
    wa1, ba1 = linear(k3, hidden, hidden)        # fcA1: Linear(64, 64)
    wv2, bv2 = linear(k4, hidden, 1)             # fcV2: Linear(64, 1)
    wa2, ba2 = linear(k5, hidden, num_actions)   # fcA2: Linear(64, num_actions)
    return dict(w1=w1, b1=b1, wv1=wv1, bv1=bv1, wa1=wa1, ba1=ba1,
                wv2=wv2, bv2=bv2, wa2=wa2, ba2=ba2)


def reference_forward(x, p):
    """Pure-JAX fp32 reference matching the PyTorch forward exactly."""
    h = jnp.maximum(x @ p["w1"] + p["b1"], 0.0)
    V = (h @ p["wv1"] + p["bv1"]) @ p["wv2"] + p["bv2"]
    A = (h @ p["wa1"] + p["ba1"]) @ p["wa2"] + p["ba2"]
    return V + (A - A.mean(axis=1, keepdims=True))


if __name__ == "__main__":
    key = jax.random.PRNGKey(0)
    k_params, k_x = jax.random.split(key)

    batch = 2
    hidden = 64        # fc1 is Linear(64, 64) => input feature dim is 64
    num_actions = 4

    params = init_params(k_params, hidden=hidden, num_actions=num_actions)
    x = jax.random.normal(k_x, (batch, hidden), jnp.float32)

    prepared = prepare_params(params)
    out = advantage_finance_net_with_position(x, prepared)
    out = jax.block_until_ready(out)

    ref = reference_forward(x, params)
    assert out.shape == (batch, num_actions)
    # bf16 MXU inputs (f32 accumulate) -> loose-but-meaningful tolerance vs fp32 ref.
    assert jnp.allclose(out, ref, atol=5e-2, rtol=5e-2), \
        float(jnp.max(jnp.abs(out - ref)))

    print("KERNEL_OK")
</pallas_src>

<mosaic_0001>
module attributes {stable_mosaic.version = 11 : i64} {
  func.func @_dueling_folded_kernel(%arg0: i32, %arg1: memref<2x64xf32, #tpu.memory_space<vmem>>, %arg2: memref<64x64xbf16, #tpu.memory_space<vmem>>, %arg3: memref<1x64xf32, #tpu.memory_space<vmem>>, %arg4: memref<64x4xbf16, #tpu.memory_space<vmem>>, %arg5: memref<1x4xf32, #tpu.memory_space<vmem>>, %arg6: memref<2x4xf32, #tpu.memory_space<vmem>>) attributes {dimension_semantics = [#tpu.dimension_semantics<parallel>], iteration_bounds = array<i64: 1>, scalar_prefetch = 0 : i64, scratch_operands = 0 : i64, tpu.core_type = #tpu.core_type<tc>, window_params = [{transform_indices = @transform_0, window_bounds = array<i64: 2, 64>}, {pipeline_mode = #tpu.pipeline_mode<synchronous>, transform_indices = @transform_1, window_bounds = array<i64: 64, 64>}, {pipeline_mode = #tpu.pipeline_mode<synchronous>, transform_indices = @transform_2, window_bounds = array<i64: 1, 64>}, {pipeline_mode = #tpu.pipeline_mode<synchronous>, transform_indices = @transform_3, window_bounds = array<i64: 64, 4>}, {pipeline_mode = #tpu.pipeline_mode<synchronous>, transform_indices = @transform_4, window_bounds = array<i64: 1, 4>}, {transform_indices = @transform_5, window_bounds = array<i64: 2, 4>}]} {
    %c0 = arith.constant 0 : index
    %c0_0 = arith.constant 0 : index
    %0 = vector.load %arg1[%c0, %c0_0] : memref<2x64xf32, #tpu.memory_space<vmem>>, vector<2x64xf32>
    %1 = arith.truncf %0 : vector<2x64xf32> to vector<2x64xbf16>
    %c0_1 = arith.constant 0 : index
    %c0_2 = arith.constant 0 : index
    %2 = vector.load %arg2[%c0_1, %c0_2] : memref<64x64xbf16, #tpu.memory_space<vmem>>, vector<64x64xbf16>
    %cst = arith.constant dense<0.000000e+00> : vector<2x64xf32>
    %3 = tpu.matmul %1, %2, %cst {dimension_numbers = #tpu.dot_dimension_numbers<[1], [0], [0], [1], [0, 0, 1, 1], [], []>} : vector<2x64xbf16>, vector<64x64xbf16>, vector<2x64xf32> -> vector<2x64xf32>
    %c0_3 = arith.constant 0 : index
    %c0_4 = arith.constant 0 : index
    %4 = vector.load %arg3[%c0_3, %c0_4] : memref<1x64xf32, #tpu.memory_space<vmem>>, vector<1x64xf32>
    %5 = vector.broadcast %4 : vector<1x64xf32> to vector<2x64xf32>
    %6 = arith.addf %3, %5 : vector<2x64xf32>
    %cst_5 = arith.constant 0.000000e+00 : f32
    %7 = vector.broadcast %cst_5 : f32 to vector<2x64xf32>
    %8 = arith.maximumf %6, %7 : vector<2x64xf32>
    %9 = arith.truncf %8 : vector<2x64xf32> to vector<2x64xbf16>
    %c0_6 = arith.constant 0 : index
    %c0_7 = arith.constant 0 : index
    %10 = vector.load %arg4[%c0_6, %c0_7] : memref<64x4xbf16, #tpu.memory_space<vmem>>, vector<64x4xbf16>
    %cst_8 = arith.constant dense<0.000000e+00> : vector<2x4xf32>
    %11 = tpu.matmul %9, %10, %cst_8 {dimension_numbers = #tpu.dot_dimension_numbers<[1], [0], [0], [1], [0, 0, 1, 1], [], []>} : vector<2x64xbf16>, vector<64x4xbf16>, vector<2x4xf32> -> vector<2x4xf32>
    %c0_9 = arith.constant 0 : index
    %c0_10 = arith.constant 0 : index
    %12 = vector.load %arg5[%c0_9, %c0_10] : memref<1x4xf32, #tpu.memory_space<vmem>>, vector<1x4xf32>
    %13 = vector.broadcast %12 : vector<1x4xf32> to vector<2x4xf32>
    %14 = arith.addf %11, %13 : vector<2x4xf32>
    %c0_11 = arith.constant 0 : index
    %c0_12 = arith.constant 0 : index
    %15 = vector.load %arg6[%c0_11, %c0_12] : memref<2x4xf32, #tpu.memory_space<vmem>>, vector<2x4xf32>
    tpu.vector_store %arg6[%c0_11, %c0_12], %14 {strides = array<i32>} : memref<2x4xf32, #tpu.memory_space<vmem>>, vector<2x4xf32>,
    return
  }
  func.func @transform_0(%arg0: i32) -> (i32, i32) {
    %c0_i32 = arith.constant 0 : i32
    %c0_i32_0 = arith.constant 0 : i32
    return %arg0, %c0_i32 : i32, i32
  }
  func.func @transform_1(%arg0: i32) -> (i32, i32) {
    %c0_i32 = arith.constant 0 : i32
    %c0_i32_0 = arith.constant 0 : i32
    %c0_i32_1 = arith.constant 0 : i32
    return %c0_i32, %c0_i32_0 : i32, i32
  }
  func.func @transform_2(%arg0: i32) -> (i32, i32) {
    %c0_i32 = arith.constant 0 : i32
    %c0_i32_0 = arith.constant 0 : i32
    %c0_i32_1 = arith.constant 0 : i32
    return %c0_i32, %c0_i32_0 : i32, i32
  }
  func.func @transform_3(%arg0: i32) -> (i32, i32) {
    %c0_i32 = arith.constant 0 : i32
    %c0_i32_0 = arith.constant 0 : i32
    %c0_i32_1 = arith.constant 0 : i32
    return %c0_i32, %c0_i32_0 : i32, i32
  }
  func.func @transform_4(%arg0: i32) -> (i32, i32) {
    %c0_i32 = arith.constant 0 : i32
    %c0_i32_0 = arith.constant 0 : i32
    %c0_i32_1 = arith.constant 0 : i32
    return %c0_i32, %c0_i32_0 : i32, i32
  }
  func.func @transform_5(%arg0: i32) -> (i32, i32) {
    %c0_i32 = arith.constant 0 : i32
    %c0_i32_0 = arith.constant 0 : i32
    return %arg0, %c0_i32 : i32, i32
  }
}

</mosaic_0001>

<llo_original>
// kernel: tpu_custom_call.1
$region0: #{tpu_custom_call.1}
  #allocation0 [shape = 'u32[]', space=smem, size = 0x4, offset = 0x4, fixed_abs, tag = 'smem constant byte address 0x4 - core index']
  #allocation1 [shape = 'u32[144,128]{1,0:T(1,128)}', space=vmem, size = 0x12000, scoped, tag = 'internal scratch']
  %s0 = inlined_call_operand.vmem [shape: f32[2,64], index: 0, kind: input, shape index: {}]
  %s1 = inlined_call_operand.vmem [shape: bf16[64,64], index: 1, kind: input, shape index: {}]
  %s2 = inlined_call_operand.vmem [shape: f32[1,64], index: 2, kind: input, shape index: {}]
  %s3 = inlined_call_operand.vmem [shape: bf16[64,4], index: 3, kind: input, shape index: {}]
  %s4 = inlined_call_operand.vmem [shape: f32[1,4], index: 4, kind: input, shape index: {}]
  %s5 = inlined_call_operand.hbm [shape: f32[2,4], index: 5, kind: output, shape index: {}]
  %s6 = sld [smem:[#allocation0]]
  $region30: #{tpu_custom_call.1} parent=0
    _
  %s8 = ssub.s32 1, %s6
  %s9 = scalar_select 0, %s8, %s6
  $region1: #{tpu_custom_call.1} parent=0
    #allocation2 [shape = 'u8[1024]{0}', space=vmem, size = 0x400, scoped, tag = 'output window, operand 0, single buffered']
    #allocation3 [shape = 's32[1]{0}', space=sflag, size = 0x4, scoped, tag = 'scoped memory for tpu_custom_call.1']
    %10 = vsyncpa [#allocation3], 0
    // Predicated region
    $region2: #{tpu_custom_call.1} parent=1 // pred_check
      _
    $region3: #{tpu_custom_call.1} parent=1 // pred_check_branch
      %12 = sbr.rel (0) target = $region5
    $region4: #{tpu_custom_call.1} parent=1 // pred_region
      _
    $region5: #{tpu_custom_call.1} parent=1 // pred_fallthru
      _
    // Predicated region
    $region6: #{tpu_custom_call.1} parent=1 // pred_check
      _
    $region7: #{tpu_custom_call.1} parent=1 // pred_check_branch
      %14 = sbr.rel (0) target = $region9
    $region8: #{tpu_custom_call.1} parent=1 // pred_region
      _
    $region9: #{tpu_custom_call.1} parent=1 // pred_fallthru
      _
    // Predicated region
    $region10: #{tpu_custom_call.1} parent=1 // pred_check
      _
    $region11: #{tpu_custom_call.1} parent=1 // pred_check_branch
      %16 = sbr.rel (0) target = $region13
    $region12: #{tpu_custom_call.1} parent=1 // pred_region
      _
    $region13: #{tpu_custom_call.1} parent=1 // pred_fallthru
      _
    // Predicated region
    $region14: #{tpu_custom_call.1} parent=1 // pred_check
      _
    $region15: #{tpu_custom_call.1} parent=1 // pred_check_branch
      %18 = sbr.rel (0) target = $region17
    $region16: #{tpu_custom_call.1} parent=1 // pred_region
      _
    $region17: #{tpu_custom_call.1} parent=1 // pred_fallthru
      _
    // Predicated region
    $region18: #{tpu_custom_call.1} parent=1 // pred_check
      _
    $region19: #{tpu_custom_call.1} parent=1 // pred_check_branch
      %20 = sbr.rel (0) target = $region21
    $region20: #{tpu_custom_call.1} parent=1 // pred_region
      _
    $region21: #{tpu_custom_call.1} parent=1 // pred_fallthru
      _
    %v22 = vld [vmem:[%s0] sm:$0x3]
    %v23 = vpack.c.bf16 %v22, %v22
    %v24 = vld [vmem:[%s1] sm:$0xf]
    %v25 = vld [vmem:[%s1 + $0x4] sm:$0xf]
    %v26 = vld [vmem:[%s1 + $0x8] sm:$0xf]
    %v27 = vld [vmem:[%s1 + $0xc] sm:$0xf]
    %v28 = vld [vmem:[%s1 + $0x10] sm:$0xf]
    %v29 = vld [vmem:[%s1 + $0x14] sm:$0xf]
    %v30 = vld [vmem:[%s1 + $0x18] sm:$0xf]
    %v31 = vld [vmem:[%s1 + $0x1c] sm:$0xf]
    %v32 = vld [vmem:[%s2] sm:$0x1]
    %v34 = vlaneseq
    %v35 = vshrl.u32 %v34, 7
    %v36 = vsub.s32 0, %v35
    %v37 = vrot.slane %v32, %v36
    %v47 = vunpack.c.l.b16 %v24
    %v48 = vunpack.c.l.b16 %v25
    %v49 = vunpack.c.l.b16 %v26
    %v50 = vunpack.c.l.b16 %v27
    %v51 = vunpack.c.l.b16 %v28
    %v52 = vunpack.c.l.b16 %v29
    %v53 = vunpack.c.l.b16 %v30
    %v54 = vunpack.c.l.b16 %v31
    %v55 = vpack.c.b16 %v48, %v47
    %v56 = vpack.c.b16 %v50, %v49
    %v57 = vpack.c.b16 %v52, %v51
    %v58 = vpack.c.b16 %v54, %v53
    %vm63 = vcmask 523264
    %v65 = vsel %vm63, %v23, 0
    %67 = vmatprep.subr.bf16.mxu0 0
    %68 = vmatpush1.bf16.msra.mxu0 %v55
    %69 = vmatprep.subr.bf16.mxu0 0
    %70 = vmatpush1.bf16.msra.mxu0 %v56
    %71 = vmatprep.subr.bf16.mxu0 0
    %72 = vmatpush1.bf16.msra.mxu0 %v57
    %73 = vmatprep.subr.bf16.mxu0 0
    %74 = vmatpush1.bf16.msra.mxu0 %v58
    %75 = vmatprep.subr.bf16.mxu0 0
    %76 = vmatpush1.bf16.msra.mxu0 0
    %77 = vmatprep.subr.bf16.mxu0 0
    %78 = vmatpush1.bf16.msra.mxu0 0
    %79 = vmatprep.subr.bf16.mxu0 0
    %80 = vmatpush1.bf16.msra.mxu0 0
    %81 = vmatprep.subr.bf16.mxu0 0
    %82 = vmatpush1.bf16.msra.mxu0 0
    %83 = vmatprep.subr.bf16.mxu0 0
    %84 = vmatpush1.bf16.msra.mxu0 0
    %85 = vmatprep.subr.bf16.mxu0 0
    %86 = vmatpush1.bf16.msra.mxu0 0
    %87 = vmatprep.subr.bf16.mxu0 0
    %88 = vmatpush1.bf16.msra.mxu0 0
    %89 = vmatprep.subr.bf16.mxu0 0
    %90 = vmatpush1.bf16.msra.mxu0 0
    %91 = vmatprep.subr.bf16.mxu0 0
    %92 = vmatpush1.bf16.msra.mxu0 0
    %93 = vmatprep.subr.bf16.mxu0 0
    %94 = vmatpush1.bf16.msra.mxu0 0
    %95 = vmatprep.subr.bf16.mxu0 0
    %96 = vmatpush1.bf16.msra.mxu0 0
    %97 = vmatprep.subr.bf16.mxu0 0
    %98 = vmatpush1.bf16.msra.mxu0 0
    %99 = vmatprep.mubr.bf16.mxu0 0
    %100 = vmatmul.mubr.bf16.gmra.mrb[0].mxu0 %v65
    %v101 = vpop.f32.mrb[0].mxu0
    %v102 = vadd.f32 %v37, %v101
    %v103 = vpop.f32.mrb[0].mxu0
    %v104 = vpop.f32.mrb[0].mxu0
    %v105 = vpop.f32.mrb[0].mxu0
    %106 = vdwg.mxu0
    %v107 = vmax.f32 %v102, 0.0
    %v108 = vpack.c.bf16 %v107, %v107
    %v109 = vld [vmem:[%s3] sm:$0xf]
    %v110 = vld [vmem:[%s3 + $0x4] sm:$0xf]
    %v111 = vld [vmem:[%s3 + $0x8] sm:$0xf]
    %v112 = vld [vmem:[%s3 + $0xc] sm:$0xf]
    %v113 = vld [vmem:[%s3 + $0x10] sm:$0xf]
    %v114 = vld [vmem:[%s3 + $0x14] sm:$0xf]
    %v115 = vld [vmem:[%s3 + $0x18] sm:$0xf]
    %v116 = vld [vmem:[%s3 + $0x1c] sm:$0xf]
    %v117 = vld [vmem:[%s4] sm:$0x1]
    %v119 = vlaneseq
    %v120 = vshrl.u32 %v119, 7
    %v121 = vsub.s32 0, %v120
    %v122 = vrot.slane %v117, %v121
    %v132 = vunpack.c.l.b16 %v109
    %v133 = vunpack.c.l.b16 %v110
    %v134 = vunpack.c.l.b16 %v111
    %v135 = vunpack.c.l.b16 %v112
    %v136 = vunpack.c.l.b16 %v113
    %v137 = vunpack.c.l.b16 %v114
    %v138 = vunpack.c.l.b16 %v115
    %v139 = vunpack.c.l.b16 %v116
    %v140 = vpack.c.b16 %v133, %v132
    %v141 = vpack.c.b16 %v135, %v134
    %v142 = vpack.c.b16 %v137, %v136
    %v143 = vpack.c.b16 %v139, %v138
    %v149 = vsel %vm63, %v108, 0
    %151 = vmatprep.subr.bf16.mxu0 0
    %152 = vmatpush1.bf16.msra.mxu0 %v140
    %153 = vmatprep.subr.bf16.mxu0 0
    %154 = vmatpush1.bf16.msra.mxu0 %v141
    %155 = vmatprep.subr.bf16.mxu0 0
    %156 = vmatpush1.bf16.msra.mxu0 %v142
    %157 = vmatprep.subr.bf16.mxu0 0
    %158 = vmatpush1.bf16.msra.mxu0 %v143
    %159 = vmatprep.subr.bf16.mxu0 0
    %160 = vmatpush1.bf16.msra.mxu0 0
    %161 = vmatprep.subr.bf16.mxu0 0
    %162 = vmatpush1.bf16.msra.mxu0 0
    %163 = vmatprep.subr.bf16.mxu0 0
    %164 = vmatpush1.bf16.msra.mxu0 0
    %165 = vmatprep.subr.bf16.mxu0 0
    %166 = vmatpush1.bf16.msra.mxu0 0
    %167 = vmatprep.subr.bf16.mxu0 0
    %168 = vmatpush1.bf16.msra.mxu0 0
    %169 = vmatprep.subr.bf16.mxu0 0
    %170 = vmatpush1.bf16.msra.mxu0 0
    %171 = vmatprep.subr.bf16.mxu0 0
    %172 = vmatpush1.bf16.msra.mxu0 0
    %173 = vmatprep.subr.bf16.mxu0 0
    %174 = vmatpush1.bf16.msra.mxu0 0
    %175 = vmatprep.subr.bf16.mxu0 0
    %176 = vmatpush1.bf16.msra.mxu0 0
    %177 = vmatprep.subr.bf16.mxu0 0
    %178 = vmatpush1.bf16.msra.mxu0 0
    %179 = vmatprep.subr.bf16.mxu0 0
    %180 = vmatpush1.bf16.msra.mxu0 0
    %181 = vmatprep.subr.bf16.mxu0 0
    %182 = vmatpush1.bf16.msra.mxu0 0
    %183 = vmatprep.mubr.bf16.mxu0 0
    %184 = vmatmul.mubr.bf16.gmra.mrb[0].mxu0 %v149
    %v185 = vpop.f32.mrb[0].mxu0
    %v186 = vadd.f32 %v122, %v185
    %v187 = vpop.f32.mrb[0].mxu0
    %v188 = vpop.f32.mrb[0].mxu0
    %v189 = vpop.f32.mrb[0].mxu0
    %190 = vdwg.mxu0
    %vm191 = vcmask 25600
    %192 = vst.msk [vmem:[#allocation2] sm:$0x3] %vm191, %v186
    // Predicated region
    $region22: #{tpu_custom_call.1} parent=1 // pred_check
      _
    $region23: #{tpu_custom_call.1} parent=1 // pred_check_branch
      %194 = sbr.rel (0) target = $region25
    $region24: #{tpu_custom_call.1} parent=1 // pred_region
      %s196 = ssub.s32 32, 32
      %197 = vsyncadd [#allocation3], %s196
      %s199 = sshll.u32 [#allocation2], 4
      %s200 = int_to_ptr.vmem [resolvable:$true] %s199
      %202 = dma.vmem_to_hbm [thread:$0]  %s200, 32, %s5, [#allocation3]
    $region25: #{tpu_custom_call.1} parent=1 // pred_fallthru
      _
    // Predicated region
    $region26: #{tpu_custom_call.1} parent=1 // pred_check
      _
    $region27: #{tpu_custom_call.1} parent=1 // pred_check_branch
      %204 = sbr.rel (0) target = $region29
    $region28: #{tpu_custom_call.1} parent=1 // pred_region
      %205 = dma.done [#allocation3], 32
    $region29: #{tpu_custom_call.1} parent=1 // pred_fallthru
      _
    %206 = vsyncpa [#allocation3], 1

</llo_original>
